<compile_context>
chip_gen: v7x
topology: tpu7x:2x2x1
jax: 0.10.0
libtpu: 0.0.40
codegen_flags: <defaults>
</compile_context>

<pallas_src>
import functools
import math

import jax
import jax.numpy as jnp
from jax.experimental import pallas as pl
from jax.experimental.pallas import tpu as pltpu


def _se_kernel(x_ref, w1_ref, w2_ref, o_ref, *, inv_hw, channels_last, use_mxu):
    # channels_last == False: x_ref (B, C, HW)  -- spatial on lanes
    # channels_last == True : x_ref (B, HW, C)  -- channels on lanes
    # w1_ref: (C, C_r) == fc1.weight.T (f32), w2_ref: (C_r, C) == fc2.weight.T (f32)
    x = x_ref[...]
    spatial_axis = 1 if channels_last else 2

    # ---- squeeze: global average pool, f32 accumulation, no materialized f32 copy
    pooled = jnp.sum(x, axis=spatial_axis, dtype=jnp.float32) * inv_hw        # (B, C)

    # ---- excite: fc1 -> relu -> fc2 -> sigmoid on the pooled (B, C) matrix
    w1 = w1_ref[...]                                                          # (C, C_r)
    w2 = w2_ref[...]                                                          # (C_r, C)
    if use_mxu:
        h = jnp.dot(pooled, w1, preferred_element_type=jnp.float32)           # (B, C_r)
        h = jnp.maximum(h, 0.0)
        s = jnp.dot(h, w2, preferred_element_type=jnp.float32)                # (B, C)
    else:
        # Tiny mat-vecs per sample: broadcast-multiply + reduce on VPU/XLU.
        h = jnp.sum(w1[None] * pooled[:, :, None], axis=1)                    # (B, C_r)
        h = jnp.maximum(h, 0.0)
        s = jnp.sum(w2[None] * h[:, :, None], axis=1)                         # (B, C)

    # sigmoid: exp on EUP, exact reciprocal (gate precision preserved)
    s = pl.reciprocal(1.0 + jnp.exp(-s), approx=False)
    s = s.astype(x.dtype)

    # ---- scale: broadcast per-(sample, channel) gate over the spatial axis
    if channels_last:
        o_ref[...] = x * s[:, None, :]
    else:
        o_ref[...] = x * s[:, :, None]


def _choose_block_b(n, per_sample_bytes, vmem_io_budget, target_bytes=2 << 20):
    """Largest batch block that divides n, keeps double-buffered in+out under the
    VMEM budget, keeps >= 2 grid steps when possible (megacore balance on v7x),
    and stops growing once a step moves >= target_bytes."""
    best = 1
    for b in range(1, n + 1):
        if n % b:
            continue
        if n >= 2 and n // b < 2:                      # keep the grid >= 2 steps
            break
        if 4 * b * per_sample_bytes > vmem_io_budget:  # 2x input + 2x output buffers
            break
        best = b
        if b * per_sample_bytes >= target_bytes:       # big enough slab; stop
            break
    return best


def se_module(x, fc1_w, fc2_w, *, block_b=None):
    """SEModule forward.

    x     : (N, C, H, W)
    fc1_w : (C//r, C) or (C//r, C, 1, 1)   -- Conv2d 1x1, bias=False
    fc2_w : (C, C//r) or (C, C//r, 1, 1)
    """
    N, C, H, W = x.shape
    fc1_w = fc1_w.reshape(fc1_w.shape[0], C)
    C_r = fc1_w.shape[0]
    fc2_w = fc2_w.reshape(C, C_r)
    HW = H * W
    itemsize = jnp.dtype(x.dtype).itemsize

    # Layout choice: keep the lane (last) axis dense.  Spatial-on-lanes when HW is
    # a multiple of 128 (free reshape); otherwise channels-on-lanes when C is a
    # multiple of 128 (avoids masked partial stores on 7x7 / 14x14 SE layers).
    channels_last = (HW % 128 != 0) and (C % 128 == 0)
    if channels_last:
        x3 = x.reshape(N, C, HW).transpose(0, 2, 1)          # (N, HW, C)
        blk_tail = (HW, C)
    else:
        x3 = x.reshape(N, C, HW)                              # (N, C, HW)
        blk_tail = (C, HW)

    # Hoist weight transpose + f32 cast out of the kernel (done once, tiny, resident).
    w1 = fc1_w.T.astype(jnp.float32)                          # (C, C_r)
    w2 = fc2_w.T.astype(jnp.float32)                          # (C_r, C)

    per_sample_bytes = C * HW * itemsize
    # Conservative cross-generation I/O budget (v7x has only 64 MiB physical VMEM).
    vmem_io_budget = 40 * 1024 * 1024
    if block_b is None:
        block_b = _choose_block_b(N, per_sample_bytes, vmem_io_budget)
    assert N % block_b == 0, "block_b must divide the batch size"
    num_blocks = N // block_b
    use_mxu = block_b >= 8                                    # real M dim -> MXU matmuls

    weight_bytes = (w1.size + w2.size) * 4
    live_bytes = 4 * block_b * per_sample_bytes + weight_bytes
    vmem_limit = int(min(max(live_bytes * 4 // 3, 16 * 1024 * 1024), 48 * 1024 * 1024))

    kernel = functools.partial(
        _se_kernel, inv_hw=1.0 / HW, channels_last=channels_last, use_mxu=use_mxu)

    cost = pl.CostEstimate(
        flops=2 * N * C * HW + 4 * N * C * C_r,
        transcendentals=N * C,
        bytes_accessed=2 * x.size * itemsize + weight_bytes,
    )

    block_shape = (block_b,) + blk_tail
    out = pl.pallas_call(
        kernel,
        out_shape=jax.ShapeDtypeStruct(x3.shape, x.dtype),
        grid_spec=pltpu.PrefetchScalarGridSpec(
            num_scalar_prefetch=0,
            grid=(num_blocks,),
            in_specs=[
                pl.BlockSpec(block_shape, lambda b: (b, 0, 0)),
                pl.BlockSpec((C, C_r), lambda b: (0, 0)),     # resident weight block
                pl.BlockSpec((C_r, C), lambda b: (0, 0)),     # resident weight block
            ],
            out_specs=pl.BlockSpec(block_shape, lambda b: (b, 0, 0)),
        ),
        compiler_params=pltpu.CompilerParams(
            dimension_semantics=("parallel",),                # megacore over batch
            vmem_limit_bytes=vmem_limit,
        ),
        cost_estimate=cost,
    )(x3, w1, w2)

    if channels_last:
        out = out.transpose(0, 2, 1)
    return out.reshape(N, C, H, W)


def _reference(x, fc1_w, fc2_w):
    # Pure-JAX reference mirroring the PyTorch module.
    fc1_w = fc1_w.reshape(fc1_w.shape[0], x.shape[1])
    fc2_w = fc2_w.reshape(x.shape[1], fc1_w.shape[0])
    pooled = jnp.mean(x, axis=(2, 3), keepdims=True)                 # AdaptiveAvgPool2d(1)
    h = jnp.einsum("rc,ncij->nrij", fc1_w, pooled)                   # fc1 (1x1 conv, no bias)
    h = jnp.maximum(h, 0.0)                                          # ReLU
    s = jnp.einsum("cr,nrij->ncij", fc2_w, h)                        # fc2 (1x1 conv, no bias)
    s = jax.nn.sigmoid(s)                                            # Sigmoid
    return x * s


if __name__ == "__main__":
    key = jax.random.PRNGKey(0)

    # --- test 1: spatial-on-lanes path (HW multiple of 128) ---
    kx, k1, k2, key = jax.random.split(key, 4)
    batch, channels, reduction, H, W = 2, 32, 4, 16, 16
    c_r = channels // reduction
    x = jax.random.normal(kx, (batch, channels, H, W), dtype=jnp.float32)
    fc1_w = jax.random.normal(k1, (c_r, channels), dtype=jnp.float32) / math.sqrt(channels)
    fc2_w = jax.random.normal(k2, (channels, c_r), dtype=jnp.float32) / math.sqrt(c_r)
    out = jax.block_until_ready(se_module(x, fc1_w, fc2_w))
    ref = _reference(x, fc1_w, fc2_w)
    assert out.shape == x.shape
    assert jnp.allclose(out, ref, atol=1e-5, rtol=1e-5), "mismatch vs reference (test 1)"

    # --- test 2: channels-on-lanes path (HW=49 not lane-dense, C=128 is) ---
    kx, k1, k2, key = jax.random.split(key, 4)
    batch, channels, reduction, H, W = 2, 128, 16, 7, 7
    c_r = channels // reduction
    x = jax.random.normal(kx, (batch, channels, H, W), dtype=jnp.float32)
    fc1_w = jax.random.normal(k1, (c_r, channels), dtype=jnp.float32) / math.sqrt(channels)
    fc2_w = jax.random.normal(k2, (channels, c_r), dtype=jnp.float32) / math.sqrt(c_r)
    out = jax.block_until_ready(se_module(x, fc1_w, fc2_w))
    ref = _reference(x, fc1_w, fc2_w)
    assert out.shape == x.shape
    assert jnp.allclose(out, ref, atol=1e-5, rtol=1e-5), "mismatch vs reference (test 2)"

    print("KERNEL_OK")
</pallas_src>

<mosaic_0001>
module attributes {stable_mosaic.version = 11 : i64} {
  func.func @_se_kernel(%arg0: i32, %arg1: memref<1x32x256xf32, #tpu.memory_space<vmem>>, %arg2: memref<32x8xf32, #tpu.memory_space<vmem>>, %arg3: memref<8x32xf32, #tpu.memory_space<vmem>>, %arg4: memref<1x32x256xf32, #tpu.memory_space<vmem>>) attributes {dimension_semantics = [#tpu.dimension_semantics<parallel>], iteration_bounds = array<i64: 2>, scalar_prefetch = 0 : i64, scratch_operands = 0 : i64, tpu.core_type = #tpu.core_type<tc>, window_params = [{transform_indices = @transform_0, window_bounds = array<i64: 1, 32, 256>}, {pipeline_mode = #tpu.pipeline_mode<synchronous>, transform_indices = @transform_1, window_bounds = array<i64: 32, 8>}, {pipeline_mode = #tpu.pipeline_mode<synchronous>, transform_indices = @transform_2, window_bounds = array<i64: 8, 32>}, {transform_indices = @transform_3, window_bounds = array<i64: 1, 32, 256>}]} {
    %c0 = arith.constant 0 : index
    %c0_0 = arith.constant 0 : index
    %c0_1 = arith.constant 0 : index
    %0 = vector.load %arg1[%c0, %c0_0, %c0_1] : memref<1x32x256xf32, #tpu.memory_space<vmem>>, vector<1x32x256xf32>
    %cst = arith.constant dense<0.000000e+00> : vector<1x32xf32>
    %1 = vector.multi_reduction <add>, %0, %cst [2] : vector<1x32x256xf32> to vector<1x32xf32>
    %cst_2 = arith.constant 3.906250e-03 : f32
    %2 = vector.broadcast %cst_2 : f32 to vector<1x32xf32>
    %3 = arith.mulf %1, %2 : vector<1x32xf32>
    %c0_3 = arith.constant 0 : index
    %c0_4 = arith.constant 0 : index
    %4 = vector.load %arg2[%c0_3, %c0_4] : memref<32x8xf32, #tpu.memory_space<vmem>>, vector<32x8xf32>
    %c0_5 = arith.constant 0 : index
    %c0_6 = arith.constant 0 : index
    %5 = vector.load %arg3[%c0_5, %c0_6] : memref<8x32xf32, #tpu.memory_space<vmem>>, vector<8x32xf32>
    %6 = vector.shape_cast %4 : vector<32x8xf32> to vector<1x32x8xf32>
    %7 = vector.shape_cast %3 : vector<1x32xf32> to vector<1x32x1xf32>
    %8 = vector.broadcast %7 : vector<1x32x1xf32> to vector<1x32x8xf32>
    %9 = arith.mulf %6, %8 : vector<1x32x8xf32>
    %cst_7 = arith.constant dense<0.000000e+00> : vector<1x8xf32>
    %10 = vector.multi_reduction <add>, %9, %cst_7 [1] : vector<1x32x8xf32> to vector<1x8xf32>
    %cst_8 = arith.constant 0.000000e+00 : f32
    %11 = vector.broadcast %cst_8 : f32 to vector<1x8xf32>
    %12 = arith.maximumf %10, %11 : vector<1x8xf32>
    %13 = vector.shape_cast %5 : vector<8x32xf32> to vector<1x8x32xf32>
    %14 = vector.shape_cast %12 : vector<1x8xf32> to vector<1x8x1xf32>
    %15 = vector.broadcast %14 : vector<1x8x1xf32> to vector<1x8x32xf32>
    %16 = arith.mulf %13, %15 : vector<1x8x32xf32>
    %cst_9 = arith.constant dense<0.000000e+00> : vector<1x32xf32>
    %17 = vector.multi_reduction <add>, %16, %cst_9 [1] : vector<1x8x32xf32> to vector<1x32xf32>
    %cst_10 = arith.constant 0.000000e+00 : f32
    %18 = vector.broadcast %cst_10 : f32 to vector<1x32xf32>
    %19 = arith.subf %18, %17 : vector<1x32xf32>
    %20 = math.exp %19 : vector<1x32xf32>
    %cst_11 = arith.constant 1.000000e+00 : f32
    %21 = vector.broadcast %cst_11 : f32 to vector<1x32xf32>
    %22 = arith.addf %21, %20 : vector<1x32xf32>
    %23 = tpu.reciprocal %22 : vector<1x32xf32> -> vector<1x32xf32>
    %24 = vector.shape_cast %23 : vector<1x32xf32> to vector<1x32x1xf32>
    %25 = vector.broadcast %24 : vector<1x32x1xf32> to vector<1x32x256xf32>
    %26 = arith.mulf %0, %25 : vector<1x32x256xf32>
    %c0_12 = arith.constant 0 : index
    %c0_13 = arith.constant 0 : index
    %c0_14 = arith.constant 0 : index
    %27 = vector.load %arg4[%c0_12, %c0_13, %c0_14] : memref<1x32x256xf32, #tpu.memory_space<vmem>>, vector<1x32x256xf32>
    tpu.vector_store %arg4[%c0_12, %c0_13, %c0_14], %26 {strides = array<i32>} : memref<1x32x256xf32, #tpu.memory_space<vmem>>, vector<1x32x256xf32>,
    return
  }
  func.func @transform_0(%arg0: i32) -> (i32, i32, i32) {
    %c0_i32 = arith.constant 0 : i32
    %c0_i32_0 = arith.constant 0 : i32
    %c0_i32_1 = arith.constant 0 : i32
    return %arg0, %c0_i32, %c0_i32_0 : i32, i32, i32
  }
  func.func @transform_1(%arg0: i32) -> (i32, i32) {
    %c0_i32 = arith.constant 0 : i32
    %c0_i32_0 = arith.constant 0 : i32
    %c0_i32_1 = arith.constant 0 : i32
    return %c0_i32, %c0_i32_0 : i32, i32
  }
  func.func @transform_2(%arg0: i32) -> (i32, i32) {
    %c0_i32 = arith.constant 0 : i32
    %c0_i32_0 = arith.constant 0 : i32
    %c0_i32_1 = arith.constant 0 : i32
    return %c0_i32, %c0_i32_0 : i32, i32
  }
  func.func @transform_3(%arg0: i32) -> (i32, i32, i32) {
    %c0_i32 = arith.constant 0 : i32
    %c0_i32_0 = arith.constant 0 : i32
    %c0_i32_1 = arith.constant 0 : i32
    return %arg0, %c0_i32, %c0_i32_0 : i32, i32, i32
  }
}

</mosaic_0001>

<llo_original>
// kernel: tpu_custom_call.1
$region0: #{tpu_custom_call.1}
  #allocation0 [shape = 'u32[]', space=smem, size = 0x4, offset = 0x4, fixed_abs, tag = 'smem constant byte address 0x4 - core index']
  #allocation1 [shape = 'u32[144,128]{1,0:T(1,128)}', space=vmem, size = 0x12000, scoped, tag = 'internal scratch']
  %s0 = inlined_call_operand.hbm [shape: f32[2,32,256], index: 0, kind: input, shape index: {}]
  %s1 = inlined_call_operand.vmem [shape: f32[32,8], index: 1, kind: input, shape index: {}]
  %s2 = inlined_call_operand.vmem [shape: f32[8,32], index: 2, kind: input, shape index: {}]
  %s3 = inlined_call_operand.hbm [shape: f32[2,32,256], index: 3, kind: output, shape index: {}]
  %s4 = sld [smem:[#allocation0]]
  $region49: #{tpu_custom_call.1} parent=0
    _
  %s6 = ssub.s32 1, %s4
  %s7 = scalar_select 0, %s6, %s4
  $region1: #{tpu_custom_call.1} parent=0
    #allocation2 [shape = 'u8[65536]{0}', space=vmem, size = 0x10000, scoped, tag = 'input window, operand 0']
    #allocation3 [shape = 's32[2]{0}', space=sflag, size = 0x8, scoped, tag = 'scoped memory for tpu_custom_call.1']
    #allocation4 [shape = 's32[2]{0}', space=sflag, size = 0x8, scoped, tag = 'scoped memory for tpu_custom_call.1']
    #allocation5 [shape = 'u8[65536]{0}', space=vmem, size = 0x10000, scoped, tag = 'output window, operand 0']
    %8 = vsyncpa [#allocation3], 0
    %s9 = scalar_lea.sflag [#allocation3], 1
    %10 = vsyncpa %s9, 0
    %11 = vsyncpa [#allocation4], 0
    %s12 = scalar_lea.sflag [#allocation4], 1
    %13 = vsyncpa %s12, 0
    loop: start=0, step=1, limit=4
    $region2: #{tpu_custom_call.1} parent=1 // loop_pre_header
      _
    $region3: #{tpu_custom_call.1} parent=1 // loop_header
      %s15 = sphi 0, %s19
      %p16 = scmp.ge.s32.totalorder %s15, 4
      %s25 = sphi 0, %s27
      %s28 = sphi 0, %s25
      %s29 = sphi 0, %s28
      %s45 = sphi 0, %s29
      %s49 = sphi 0, %s49
      %s51 = sphi 0, %s49
      %s52 = sphi 0, %s51
      %s66 = sphi 0, %s52
      %s70 = sphi 0, %s70
      %s72 = sphi 0, %s70
      %s73 = sphi 0, %s72
      %s87 = sphi 0, %s73
      %s93 = sphi 0, %s95
      %s96 = sphi 0, %s93
      %s97 = sphi 0, %s96
      %s113 = sphi 0, %s97
    $region4: #{tpu_custom_call.1} parent=1 // loop_header_branch
      %18 = sbr.rel (%p16) target = $region8
    $region5: #{tpu_custom_call.1} parent=1 // loop_body
      %s20 = ssub.s32 %s15, 1
      %s21 = ssub.s32 %s15, 2
      %s22 = sadd.s32 %s15, 1
      %s23 = ssub.s32 %s15, %s22
      %p24 = scmp.eq.s32.totalorder %s23, 0
      %s26 = sadd.s32 %s25, 1
      %s27 = scalar_select %p24, %s25, %s26
      %p30 = pneg %p24
      %p31 = scmp.eq.s32.totalorder %s15, 1
      %p32 = por %p30, %p31
      %p33 = scmp.ne.s32.totalorder %s25, %s28
      %p34 = scmp.eq.s32.totalorder %s15, 0
      %p35 = por %p33, %p34
      %p36 = scmp.ne.s32.totalorder %s25, %s28
      %p37 = scmp.eq.s32.totalorder %s20, 1
      %p38 = por %p36, %p37
      %p39 = scmp.ne.s32.totalorder %s28, %s29
      %p40 = scmp.eq.s32.totalorder %s20, 0
      %p41 = por %p39, %p40
      %p42 = scmp.ne.s32.totalorder %s28, %s29
      %p43 = scmp.eq.s32.totalorder %s21, 1
      %p44 = por %p42, %p43
      %p46 = scmp.ne.s32.totalorder %s29, %s45
      %p47 = scmp.eq.s32.totalorder %s21, 0
      %p48 = por %p46, %p47
      %s50 = sadd.s32 %s49, 1
      %p53 = scmp.eq.s32.totalorder %s15, 1
      %p54 = scmp.ne.s32.totalorder %s49, %s51
      %p55 = scmp.eq.s32.totalorder %s15, 0
      %p56 = por %p54, %p55
      %p57 = scmp.ne.s32.totalorder %s49, %s51
      %p58 = scmp.eq.s32.totalorder %s20, 1
      %p59 = por %p57, %p58
      %p60 = scmp.ne.s32.totalorder %s51, %s52
      %p61 = scmp.eq.s32.totalorder %s20, 0
      %p62 = por %p60, %p61
      %p63 = scmp.ne.s32.totalorder %s51, %s52
      %p64 = scmp.eq.s32.totalorder %s21, 1
      %p65 = por %p63, %p64
      %p67 = scmp.ne.s32.totalorder %s52, %s66
      %p68 = scmp.eq.s32.totalorder %s21, 0
      %p69 = por %p67, %p68
      %s71 = sadd.s32 %s70, 1
      %p74 = scmp.eq.s32.totalorder %s15, 1
      %p75 = scmp.ne.s32.totalorder %s70, %s72
      %p76 = scmp.eq.s32.totalorder %s15, 0
      %p77 = por %p75, %p76
      %p78 = scmp.ne.s32.totalorder %s70, %s72
      %p79 = scmp.eq.s32.totalorder %s20, 1
      %p80 = por %p78, %p79
      %p81 = scmp.ne.s32.totalorder %s72, %s73
      %p82 = scmp.eq.s32.totalorder %s20, 0
      %p83 = por %p81, %p82
      %p84 = scmp.ne.s32.totalorder %s72, %s73
      %p85 = scmp.eq.s32.totalorder %s21, 1
      %p86 = por %p84, %p85
      %p88 = scmp.ne.s32.totalorder %s73, %s87
      %p89 = scmp.eq.s32.totalorder %s21, 0
      %p90 = por %p88, %p89
      %s91 = ssub.s32 %s15, %s22
      %p92 = scmp.eq.s32.totalorder %s91, 0
      %s94 = sadd.s32 %s93, 1
      %s95 = scalar_select %p92, %s93, %s94
      %p98 = pneg %p92
      %p99 = scmp.eq.s32.totalorder %s15, 1
      %p100 = por %p98, %p99
      %p101 = scmp.ne.s32.totalorder %s93, %s96
      %p102 = scmp.eq.s32.totalorder %s15, 0
      %p103 = por %p101, %p102
      %p104 = scmp.ne.s32.totalorder %s93, %s96
      %p105 = scmp.eq.s32.totalorder %s20, 1
      %p106 = por %p104, %p105
      %p107 = scmp.ne.s32.totalorder %s96, %s97
      %p108 = scmp.eq.s32.totalorder %s20, 0
      %p109 = por %p107, %p108
      %p110 = scmp.ne.s32.totalorder %s96, %s97
      %p111 = scmp.eq.s32.totalorder %s21, 1
      %p112 = por %p110, %p111
      %p114 = scmp.ne.s32.totalorder %s97, %s113
      %p115 = scmp.eq.s32.totalorder %s21, 0
      %p116 = por %p114, %p115
      %p117 = scmp.le.s32.totalorder 1, %s15
      %p118 = scmp.lt.s32.totalorder %s15, 3
      %p119 = pnand %p117, %p118
      %p120 = pneg %p119
      // Predicated region
      $region9: #{tpu_custom_call.1} parent=5 // pred_check
        _
      $region10: #{tpu_custom_call.1} parent=5 // pred_check_branch
        %122 = sbr.rel (%p119) target = $region12
      $region11: #{tpu_custom_call.1} parent=5 // pred_region
        %s123 = ssub.s32 %s15, 1
        // Predicated region
        $region13: #{tpu_custom_call.1} parent=11 // pred_check
          %p124 = pneg %p62
        $region14: #{tpu_custom_call.1} parent=11 // pred_check_branch
          %126 = sbr.rel (%p124) target = $region16
        $region15: #{tpu_custom_call.1} parent=11 // pred_region
          _
        $region16: #{tpu_custom_call.1} parent=11 // pred_fallthru
          _
        // Predicated region
        $region17: #{tpu_custom_call.1} parent=11 // pred_check
          %p127 = pneg %p83
        $region18: #{tpu_custom_call.1} parent=11 // pred_check_branch
          %129 = sbr.rel (%p127) target = $region20
        $region19: #{tpu_custom_call.1} parent=11 // pred_region
          _
        $region20: #{tpu_custom_call.1} parent=11 // pred_fallthru
          _
      $region12: #{tpu_custom_call.1} parent=5 // pred_fallthru
        _
      %p130 = scmp.lt.s32.totalorder %s15, 2
      // Predicated region
      $region21: #{tpu_custom_call.1} parent=5 // pred_check
        %p131 = pneg %p130
      $region22: #{tpu_custom_call.1} parent=5 // pred_check_branch
        %133 = sbr.rel (%p131) target = $region24
      $region23: #{tpu_custom_call.1} parent=5 // pred_region
        // Predicated region
        $region25: #{tpu_custom_call.1} parent=23 // pred_check
          %p134 = pneg %p35
        $region26: #{tpu_custom_call.1} parent=23 // pred_check_branch
          %136 = sbr.rel (%p134) target = $region28
        $region27: #{tpu_custom_call.1} parent=23 // pred_region
          %s137 = sand.u32 %s25, 1
          %s138 = scalar_lea.sflag [#allocation3], %s137
          %s139 = sand.u32 %s25, 1
          %s140 = smul.addr %s139, 64
          %s141 = scalar_lea.vmem [#allocation2], %s140
          %s143 = ssub.s32 1024, 1024
          %144 = vsyncadd %s138, %s143
          %s145 = smul.addr %s15, 8
          %s146 = smul.addr %s145, 128
          %s147 = scalar_lea.hbm %s0, %s146
          %s148 = sshll.u32 %s141, 4
          %s149 = int_to_ptr.vmem [resolvable:$true] %s148
          %154 = dma.hbm_to_vmem [thread:$0]  %s147, 1024, %s149, %s138, 256, 256, 16
        $region28: #{tpu_custom_call.1} parent=23 // pred_fallthru
          _
      $region24: #{tpu_custom_call.1} parent=5 // pred_fallthru
        _
      %p155 = scmp.le.s32.totalorder 1, %s15
      %p156 = scmp.lt.s32.totalorder %s15, 3
      %p157 = pnand %p155, %p156
      %p158 = pneg %p157
      // Predicated region
      $region29: #{tpu_custom_call.1} parent=5 // pred_check
        _
      $region30: #{tpu_custom_call.1} parent=5 // pred_check_branch
        %160 = sbr.rel (%p157) target = $region32
      $region31: #{tpu_custom_call.1} parent=5 // pred_region
        %s161 = ssub.s32 %s15, 1
        %s162 = sand.u32 %s28, 1
        %s163 = scalar_lea.sflag [#allocation3], %s162
        %s164 = sand.u32 %s28, 1
        %s165 = smul.addr %s164, 64
        %s166 = scalar_lea.vmem [#allocation2], %s165
        // Predicated region
        $region33: #{tpu_custom_call.1} parent=31 // pred_check
          %p167 = pneg %p41
        $region34: #{tpu_custom_call.1} parent=31 // pred_check_branch
          %169 = sbr.rel (%p167) target = $region36
        $region35: #{tpu_custom_call.1} parent=31 // pred_region
          %170 = dma.done %s163, 1024
        $region36: #{tpu_custom_call.1} parent=31 // pred_fallthru
          _
        %s171 = sand.u32 %s28, 1
        %s172 = scalar_lea.sflag [#allocation3], %s171
        %s173 = sand.u32 %s28, 1
        %s174 = smul.addr %s173, 64
        %s175 = scalar_lea.vmem [#allocation2], %s174
        %p176 = pneg %p41
        %p177 = pneg %p38
        %p178 = pneg %p62
        %p179 = pneg %p59
        %p180 = pneg %p83
        %p181 = pneg %p80
        %p182 = pneg %p109
        %p183 = pneg %p106
        %s184 = sand.u32 %s96, 1
        %s185 = scalar_lea.sflag [#allocation4], %s184
        %s186 = sand.u32 %s96, 1
        %s187 = smul.addr %s186, 64
        %s188 = scalar_lea.vmem [#allocation5], %s187
        %v189 = vld [vmem:[%s166] sm:$0xff]
        %v190 = vld [vmem:[%s166 + $0x8] sm:$0xff]
        %v191 = vld [vmem:[%s166 + $0x10] sm:$0xff]
        %v192 = vld [vmem:[%s166 + $0x18] sm:$0xff]
        %v193 = vld [vmem:[%s166 + $0x20] sm:$0xff]
        %v194 = vld [vmem:[%s166 + $0x28] sm:$0xff]
        %v195 = vld [vmem:[%s166 + $0x30] sm:$0xff]
        %v196 = vld [vmem:[%s166 + $0x38] sm:$0xff]
        %v197 = vadd.f32 %v189, %v190
        %198 = vadd.xlane.f32.xlu0 %v197
        %v199 = vpop.xlane.xlu0 %198
        %v200 = vadd.f32 %v191, %v192
        %201 = vadd.xlane.f32.xlu0 %v200
        %v202 = vpop.xlane.xlu0 %201
        %v203 = vadd.f32 %v193, %v194
        %204 = vadd.xlane.f32.xlu0 %v203
        %v205 = vpop.xlane.xlu0 %204
        %v206 = vadd.f32 %v195, %v196
        %207 = vadd.xlane.f32.xlu0 %v206
        %v208 = vpop.xlane.xlu0 %207
        %v209 = vmul.f32 %v199, 0.00390625
        %v210 = vmul.f32 %v202, 0.00390625
        %v211 = vmul.f32 %v205, 0.00390625
        %v212 = vmul.f32 %v208, 0.00390625
        %v213 = vld [vmem:[%s1] sm:$0xff]
        %v214 = vld [vmem:[%s1 + $0x8] sm:$0xff]
        %v215 = vld [vmem:[%s1 + $0x10] sm:$0xff]
        %v216 = vld [vmem:[%s1 + $0x18] sm:$0xff]
        %v217 = vld [vmem:[%s2] sm:$0xff]
        %v218 = vmul.f32 %v213, %v209
        %v219 = vmul.f32 %v214, %v210
        %v220 = vmul.f32 %v215, %v211
        %v221 = vmul.f32 %v216, %v212
        %vm222 = vcmask 64512
        %v223 = vsel %vm222, %v218, 0.0
        %v224 = vsel %vm222, %v219, 0.0
        %v225 = vadd.f32 %v223, %v224
        %v226 = vsel %vm222, %v220, 0.0
        %v227 = vadd.f32 %v225, %v226
        %v228 = vsel %vm222, %v221, 0.0
        %v229 = vadd.f32 %v227, %v228
        %v230 = vrot.slane %v229, 4
        %v231 = vadd.f32 %v229, %v230
        %v232 = vrot.slane %v231, 2
        %v233 = vadd.f32 %v231, %v232
        %v234 = vrot.slane %v233, 1
        %v235 = vadd.f32 %v233, %v234
        %v236 = vmax.f32 %v235, 0.0
        %238 = vbcast.lane.b32.xlu0 %v236, 256
        %v239 = vpop.permute.xlu0 %238
        %v240 = vmul.f32 %v217, %v239
        %vm241 = vcmask 261120
        %v242 = vsel %vm241, %v240, 0.0
        %v243 = vrot.slane %v242, 4
        %v244 = vadd.f32 %v242, %v243
        %v245 = vrot.slane %v244, 2
        %v246 = vadd.f32 %v244, %v245
        %v247 = vrot.slane %v246, 1
        %v248 = vadd.f32 %v246, %v247
        %v249 = vsub.f32 0.0, %v248
        %v250 = vmul.f32 %v249, 1.442695
        %v251 = vpow.pop %v250
        %v252 = vadd.f32 %v251, 1.0
        %v253 = vrcp.pop %v252
        %255 = vbcast.lane.b32.xlu0 %v253, 256
        %v256 = vpop.permute.xlu0 %255
        %s258 = sor.u32 256, 8
        %259 = vbcast.lane.b32.xlu0 %v253, %s258
        %v260 = vpop.permute.xlu0 %259
        %s262 = sor.u32 256, 16
        %263 = vbcast.lane.b32.xlu0 %v253, %s262
        %v264 = vpop.permute.xlu0 %263
        %s266 = sor.u32 256, 24
        %267 = vbcast.lane.b32.xlu0 %v253, %s266
        %v268 = vpop.permute.xlu0 %267
        %v269 = vmul.f32 %v189, %v256
        %v270 = vmul.f32 %v190, %v256
        %v271 = vmul.f32 %v191, %v260
        %v272 = vmul.f32 %v192, %v260
        %v273 = vmul.f32 %v193, %v264
        %v274 = vmul.f32 %v194, %v264
        %v275 = vmul.f32 %v195, %v268
        %v276 = vmul.f32 %v196, %v268
        %277 = vst [vmem:[%s188] sm:$0xff] %v269
        %278 = vst [vmem:[%s188 + $0x8] sm:$0xff] %v270
        %279 = vst [vmem:[%s188 + $0x10] sm:$0xff] %v271
        %280 = vst [vmem:[%s188 + $0x18] sm:$0xff] %v272
        %281 = vst [vmem:[%s188 + $0x20] sm:$0xff] %v273
        %282 = vst [vmem:[%s188 + $0x28] sm:$0xff] %v274
        %283 = vst [vmem:[%s188 + $0x30] sm:$0xff] %v275
        %284 = vst [vmem:[%s188 + $0x38] sm:$0xff] %v276
        %s285 = sand.u32 %s96, 1
        %s286 = scalar_lea.sflag [#allocation4], %s285
        %s287 = sand.u32 %s96, 1
        %s288 = smul.addr %s287, 64
        %s289 = scalar_lea.vmem [#allocation5], %s288
        // Predicated region
        $region37: #{tpu_custom_call.1} parent=31 // pred_check
          %p290 = pneg %p106
        $region38: #{tpu_custom_call.1} parent=31 // pred_check_branch
          %292 = sbr.rel (%p290) target = $region40
        $region39: #{tpu_custom_call.1} parent=31 // pred_region
          %s294 = ssub.s32 1024, 1024
          %295 = vsyncadd %s286, %s294
          %s296 = smul.addr %s20, 8
          %s297 = smul.addr %s296, 128
          %s298 = scalar_lea.hbm %s3, %s297
          %s299 = sshll.u32 %s289, 4
          %s300 = int_to_ptr.vmem [resolvable:$true] %s299
          %305 = dma.vmem_to_hbm [thread:$0]  %s300, 1024, %s298, %s286, 256, 256, 16
        $region40: #{tpu_custom_call.1} parent=31 // pred_fallthru
          _
      $region32: #{tpu_custom_call.1} parent=5 // pred_fallthru
        _
      %p306 = scmp.le.s32.totalorder 2, %s15
      // Predicated region
      $region41: #{tpu_custom_call.1} parent=5 // pred_check
        %p307 = pneg %p306
      $region42: #{tpu_custom_call.1} parent=5 // pred_check_branch
        %309 = sbr.rel (%p307) target = $region44
      $region43: #{tpu_custom_call.1} parent=5 // pred_region
        %s310 = ssub.s32 %s15, 2
        // Predicated region
        $region45: #{tpu_custom_call.1} parent=43 // pred_check
          %p311 = pneg %p112
        $region46: #{tpu_custom_call.1} parent=43 // pred_check_branch
          %313 = sbr.rel (%p311) target = $region48
        $region47: #{tpu_custom_call.1} parent=43 // pred_region
          %s314 = sand.u32 %s97, 1
          %s315 = scalar_lea.sflag [#allocation4], %s314
          %s316 = sand.u32 %s97, 1
          %s317 = smul.addr %s316, 64
          %s318 = scalar_lea.vmem [#allocation5], %s317
          %319 = dma.done %s315, 1024
        $region48: #{tpu_custom_call.1} parent=43 // pred_fallthru
          _
      $region44: #{tpu_custom_call.1} parent=5 // pred_fallthru
        _
    $region6: #{tpu_custom_call.1} parent=1 // loop_footer
      %s19 = sadd.s32 1, %s15
    $region7: #{tpu_custom_call.1} parent=1 // loop_footer_branch
      %14 = sbr.rel target = $region3
    $region8: #{tpu_custom_call.1} parent=1 // loop_exit
      _
    %320 = vsyncpa [#allocation3], 1
    %s321 = scalar_lea.sflag [#allocation3], 1
    %322 = vsyncpa %s321, 1
    %323 = vsyncpa [#allocation4], 1
    %s324 = scalar_lea.sflag [#allocation4], 1
    %325 = vsyncpa %s324, 1

</llo_original>
